<compile_context>
chip_gen: v7x
topology: tpu7x:2x2x1
jax: 0.10.0
libtpu: 0.0.40
codegen_flags: <defaults>
</compile_context>

<pallas_src>
import functools
import numpy as np
import jax
import jax.numpy as jnp
from jax.experimental import pallas as pl
from jax.experimental.pallas import tpu as pltpu

LN_EPS = 1e-5  # torch.nn.LayerNorm default eps


def var_predictor_kernel(x_ref,
                         c1w_ref, c1b_ref, ln1g_ref, ln1b_ref,
                         c2w_ref, c2b_ref, ln2g_ref, ln2b_ref,
                         lw_ref, lb_ref,
                         out_ref,
                         *, seq_len, matmul_dtype):
    x = x_ref[...]                                   # (M, E) f32, M = B_blk * T
    M = x.shape[0]
    T = seq_len

    # Per-sequence boundary masks, hoisted and shared by both conv layers.
    t_idx = jax.lax.broadcasted_iota(jnp.int32, (M, 1), 0) % T
    first_row = t_idx == 0          # t == 0     -> h[t-1] is the conv zero pad
    last_row = t_idx == T - 1       # t == T-1   -> h[t+1] is the conv zero pad

    def conv1d_k3(h, w_ref, b_ref):
        # h: (M, Cin).  w_ref: (3, Cin, Cout) tap-major.  +-1 shifts via XLU rolls;
        # boundary mask zeroes both the conv padding rows and cross-batch leakage.
        h_prev = jnp.where(first_row, 0.0, pltpu.roll(h, 1, axis=0))
        h_next = jnp.where(last_row, 0.0, pltpu.roll(h, M - 1, axis=0))
        # Three accumulating MXU pushes (Cin not a multiple of 128 -> no lane concat).
        y = jnp.dot(h_prev.astype(matmul_dtype), w_ref[0],
                    preferred_element_type=jnp.float32)
        y += jnp.dot(h.astype(matmul_dtype), w_ref[1],
                     preferred_element_type=jnp.float32)
        y += jnp.dot(h_next.astype(matmul_dtype), w_ref[2],
                     preferred_element_type=jnp.float32)
        return y + b_ref[...]                        # (1, Cout) broadcasts over M

    def layernorm_relu(h, g_ref, b_ref):
        # One-pass stats: independent sum / sum-of-squares reductions on the XLU.
        mu = jnp.mean(h, axis=-1, keepdims=True)
        ms = jnp.mean(h * h, axis=-1, keepdims=True)
        var = ms - mu * mu
        hn = (h - mu) * jax.lax.rsqrt(var + LN_EPS)
        return jnp.maximum(hn * g_ref[...] + b_ref[...], 0.0)

    # conv_net block 1: Conv1d -> LayerNorm -> ReLU -> Dropout(no-op in eval)
    h = layernorm_relu(conv1d_k3(x, c1w_ref, c1b_ref), ln1g_ref, ln1b_ref)
    # conv_net block 2
    h = layernorm_relu(conv1d_k3(h, c2w_ref, c2b_ref), ln2g_ref, ln2b_ref)

    # linear_layer (F -> 1) + ReLU, emitted directly as a lane-dense (1, M) row.
    o = jnp.einsum("of,mf->om", lw_ref[...], h.astype(matmul_dtype),
                   preferred_element_type=jnp.float32)               # (1, M)
    out_ref[0] = jnp.maximum(o + lb_ref[...], 0.0)


def _pick_block_b(B, T):
    # Smallest divisor of B whose slab gives >=128 lanes for the output row and a
    # sublane-aligned block; otherwise take the whole batch in one step.
    for d in range(1, B + 1):
        if B % d == 0 and (d * T) % 8 == 0 and d * T >= 128:
            return d
    return B


def var_predictor_forward(x, packed, *, block_b=None, matmul_dtype=jnp.float32):
    """x: (B, T, E) f32 -> (1, B, T) f32 (eval-mode semantics of VarPredictor)."""
    B, T, E = x.shape
    if block_b is None:
        block_b = _pick_block_b(B, T)
    assert B % block_b == 0
    num_blocks = B // block_b
    M = block_b * T

    # Free contiguous reshape in XLA; the kernel sees sublane-aligned (M, E) slabs.
    x2 = x.reshape(B * T, E)

    def resident(a):
        # Full-array block with a constant index map: stays VMEM-resident.
        return pl.BlockSpec(a.shape, lambda b, n=a.ndim: (0,) * n)

    kernel = functools.partial(var_predictor_kernel,
                               seq_len=T, matmul_dtype=matmul_dtype)

    out = pl.pallas_call(
        kernel,
        out_shape=jax.ShapeDtypeStruct((num_blocks, 1, M), jnp.float32),
        grid=(num_blocks,),
        in_specs=[
            pl.BlockSpec((M, E), lambda b: (b, 0)),      # batch-blocked input slab
            resident(packed["c1w"]), resident(packed["c1b"]),
            resident(packed["ln1g"]), resident(packed["ln1b"]),
            resident(packed["c2w"]), resident(packed["c2b"]),
            resident(packed["ln2g"]), resident(packed["ln2b"]),
            resident(packed["lw"]), resident(packed["lb"]),
        ],
        out_specs=pl.BlockSpec((1, 1, M), lambda b: (b, 0, 0)),  # lane-dense row
        compiler_params=pltpu.CompilerParams(dimension_semantics=("parallel",)),
    )(x2,
      packed["c1w"], packed["c1b"], packed["ln1g"], packed["ln1b"],
      packed["c2w"], packed["c2b"], packed["ln2g"], packed["ln2b"],
      packed["lw"], packed["lb"])

    # (num_blocks, 1, M) -> (B, T) -> eval-mode unsqueeze(0) -> (1, B, T)
    return out.reshape(B, T)[None]


def pack_params(tp, *, matmul_dtype=jnp.float32):
    """Torch-layout params -> kernel layout.

    Conv1d weight (Cout, Cin, 3) is repacked tap-major to (3, Cin, Cout) so that
    h_prev @ w[0] + h @ w[1] + h_next @ w[2] reproduces Conv1d(kernel=3, padding=1).
    Matmul weights are pre-cast to `matmul_dtype` (bf16 for v6e/v7x); biases and
    LayerNorm params stay f32.
    """
    def conv_w(w):
        return jnp.transpose(w, (2, 1, 0)).astype(matmul_dtype)   # (3, Cin, Cout)

    return {
        "c1w": conv_w(tp["conv1_w"]),
        "c1b": tp["conv1_b"].reshape(1, -1).astype(jnp.float32),
        "ln1g": tp["ln1_g"].reshape(1, -1).astype(jnp.float32),
        "ln1b": tp["ln1_b"].reshape(1, -1).astype(jnp.float32),
        "c2w": conv_w(tp["conv2_w"]),
        "c2b": tp["conv2_b"].reshape(1, -1).astype(jnp.float32),
        "ln2g": tp["ln2_g"].reshape(1, -1).astype(jnp.float32),
        "ln2b": tp["ln2_b"].reshape(1, -1).astype(jnp.float32),
        "lw": tp["lin_w"].reshape(1, -1).astype(matmul_dtype),    # torch Linear (1, F)
        "lb": tp["lin_b"].reshape(1, 1).astype(jnp.float32),
    }


def var_predictor_reference(x, tp):
    """Pure-JAX mirror of the PyTorch VarPredictor.forward (eval mode)."""
    def conv(h, w, b):                          # h: (B,T,Cin), w: (Cout,Cin,3)
        T = h.shape[1]
        hp = jnp.pad(h, ((0, 0), (1, 1), (0, 0)))
        y = sum(hp[:, k:k + T] @ w[:, :, k].T for k in range(3))
        return y + b

    def ln(h, g, b):
        mu = h.mean(-1, keepdims=True)
        v = jnp.square(h - mu).mean(-1, keepdims=True)
        return (h - mu) * jax.lax.rsqrt(v + LN_EPS) * g + b

    h = jax.nn.relu(ln(conv(x, tp["conv1_w"], tp["conv1_b"]), tp["ln1_g"], tp["ln1_b"]))
    h = jax.nn.relu(ln(conv(h, tp["conv2_w"], tp["conv2_b"]), tp["ln2_g"], tp["ln2_b"]))
    o = jax.nn.relu(h @ tp["lin_w"].T + tp["lin_b"])          # (B, T, 1)
    return o[..., 0][None]                                    # squeeze + unsqueeze(0)


if __name__ == "__main__":
    # Small shapes consistent with VarPredictor: batch=2, seq=8, encoder_dim=32,
    # predictor_filter_size=32, predictor_kernel_size=3 (padding=1), eval mode.
    B, T, E, F = 2, 8, 32, 32
    key = jax.random.PRNGKey(0)
    ks = jax.random.split(key, 8)

    torch_params = {
        "conv1_w": jax.random.normal(ks[0], (F, E, 3), jnp.float32) * 0.1,
        "conv1_b": jax.random.normal(ks[1], (F,), jnp.float32) * 0.1,
        "ln1_g": jnp.ones((F,), jnp.float32),
        "ln1_b": jnp.zeros((F,), jnp.float32),
        "conv2_w": jax.random.normal(ks[2], (F, F, 3), jnp.float32) * 0.1,
        "conv2_b": jax.random.normal(ks[3], (F,), jnp.float32) * 0.1,
        "ln2_g": jnp.ones((F,), jnp.float32),
        "ln2_b": jnp.zeros((F,), jnp.float32),
        "lin_w": jax.random.normal(ks[4], (1, F), jnp.float32) * 0.1,
        "lin_b": jax.random.normal(ks[5], (1,), jnp.float32) * 0.1,
    }
    x = jax.random.normal(ks[6], (B, T, E), jnp.float32)

    # Default f32 matmul path keeps the demo numerics exact; pass
    # matmul_dtype=jnp.bfloat16 to pack_params + var_predictor_forward on v6e/v7x.
    packed = pack_params(torch_params)
    out = var_predictor_forward(x, packed)
    jax.block_until_ready(out)

    ref = var_predictor_reference(x, torch_params)
    assert out.shape == (1, B, T), out.shape
    np.testing.assert_allclose(np.asarray(out), np.asarray(ref), rtol=1e-3, atol=1e-3)
    print("KERNEL_OK")
</pallas_src>

<mosaic_0001>
module attributes {stable_mosaic.version = 11 : i64} {
  func.func @var_predictor_kernel(%arg0: i32, %arg1: memref<16x32xf32, #tpu.memory_space<vmem>>, %arg2: memref<3x32x32xf32, #tpu.memory_space<vmem>>, %arg3: memref<1x32xf32, #tpu.memory_space<vmem>>, %arg4: memref<1x32xf32, #tpu.memory_space<vmem>>, %arg5: memref<1x32xf32, #tpu.memory_space<vmem>>, %arg6: memref<3x32x32xf32, #tpu.memory_space<vmem>>, %arg7: memref<1x32xf32, #tpu.memory_space<vmem>>, %arg8: memref<1x32xf32, #tpu.memory_space<vmem>>, %arg9: memref<1x32xf32, #tpu.memory_space<vmem>>, %arg10: memref<1x32xf32, #tpu.memory_space<vmem>>, %arg11: memref<1x1xf32, #tpu.memory_space<vmem>>, %arg12: memref<1x1x16xf32, #tpu.memory_space<vmem>>) attributes {dimension_semantics = [#tpu.dimension_semantics<parallel>], iteration_bounds = array<i64: 1>, scalar_prefetch = 0 : i64, scratch_operands = 0 : i64, tpu.core_type = #tpu.core_type<tc>, window_params = [{transform_indices = @transform_0, window_bounds = array<i64: 16, 32>}, {pipeline_mode = #tpu.pipeline_mode<synchronous>, transform_indices = @transform_1, window_bounds = array<i64: 3, 32, 32>}, {pipeline_mode = #tpu.pipeline_mode<synchronous>, transform_indices = @transform_2, window_bounds = array<i64: 1, 32>}, {pipeline_mode = #tpu.pipeline_mode<synchronous>, transform_indices = @transform_3, window_bounds = array<i64: 1, 32>}, {pipeline_mode = #tpu.pipeline_mode<synchronous>, transform_indices = @transform_4, window_bounds = array<i64: 1, 32>}, {pipeline_mode = #tpu.pipeline_mode<synchronous>, transform_indices = @transform_5, window_bounds = array<i64: 3, 32, 32>}, {pipeline_mode = #tpu.pipeline_mode<synchronous>, transform_indices = @transform_6, window_bounds = array<i64: 1, 32>}, {pipeline_mode = #tpu.pipeline_mode<synchronous>, transform_indices = @transform_7, window_bounds = array<i64: 1, 32>}, {pipeline_mode = #tpu.pipeline_mode<synchronous>, transform_indices = @transform_8, window_bounds = array<i64: 1, 32>}, {pipeline_mode = #tpu.pipeline_mode<synchronous>, transform_indices = @transform_9, window_bounds = array<i64: 1, 32>}, {pipeline_mode = #tpu.pipeline_mode<synchronous>, transform_indices = @transform_10, window_bounds = array<i64: 1, 1>}, {transform_indices = @transform_11, window_bounds = array<i64: 1, 1, 16>}]} {
    %c0 = arith.constant 0 : index
    %c0_0 = arith.constant 0 : index
    %0 = vector.load %arg1[%c0, %c0_0] : memref<16x32xf32, #tpu.memory_space<vmem>>, vector<16x32xf32>
    %1 = tpu.iota {dimensions = array<i32: 0>} : vector<16x1xi32>
    %c8_i32 = arith.constant 8 : i32
    %c0_i32 = arith.constant 0 : i32
    %2 = arith.cmpi eq, %c8_i32, %c0_i32 : i32
    %c1_i32 = arith.constant 1 : i32
    %3 = arith.select %2, %c1_i32, %c8_i32 : i32
    %4 = vector.broadcast %3 : i32 to vector<16x1xi32>
    %5 = arith.remsi %1, %4 : vector<16x1xi32>
    %c0_i32_1 = arith.constant 0 : i32
    %6 = vector.broadcast %c0_i32_1 : i32 to vector<16x1xi32>
    %7 = arith.cmpi ne, %5, %6 : vector<16x1xi32>
    %c0_i32_2 = arith.constant 0 : i32
    %8 = vector.broadcast %c0_i32_2 : i32 to vector<16x1xi32>
    %9 = arith.cmpi slt, %5, %8 : vector<16x1xi32>
    %c0_i32_3 = arith.constant 0 : i32
    %10 = arith.cmpi slt, %3, %c0_i32_3 : i32
    %11 = vector.broadcast %10 : i1 to vector<16x1xi1>
    %12 = vector.broadcast %11 : vector<16x1xi1> to vector<16x1xi1>
    %13 = arith.xori %9, %12 : vector<16x1xi1>
    %14 = arith.andi %13, %7 : vector<16x1xi1>
    %15 = vector.broadcast %3 : i32 to vector<16x1xi32>
    %16 = arith.addi %5, %15 : vector<16x1xi32>
    %17 = arith.select %14, %16, %5 : vector<16x1xi1>, vector<16x1xi32>
    %c0_i32_4 = arith.constant 0 : i32
    %18 = vector.broadcast %c0_i32_4 : i32 to vector<16x1xi32>
    %19 = arith.cmpi eq, %17, %18 : vector<16x1xi32>
    %c7_i32 = arith.constant 7 : i32
    %20 = vector.broadcast %c7_i32 : i32 to vector<16x1xi32>
    %21 = arith.cmpi eq, %17, %20 : vector<16x1xi32>
    %c1_i32_5 = arith.constant 1 : i32
    %22 = tpu.dynamic_rotate %0 by %c1_i32_5 dim 0 : vector<16x32xf32>, i32 -> vector<16x32xf32>
    %cst = arith.constant 0.000000e+00 : f32
    %23 = vector.shape_cast %19 : vector<16x1xi1> to vector<16x1xi1>
    %24 = vector.broadcast %23 : vector<16x1xi1> to vector<16x32xi1>
    %25 = vector.broadcast %cst : f32 to vector<16x32xf32>
    %26 = arith.select %24, %25, %22 : vector<16x32xi1>, vector<16x32xf32>
    %c15_i32 = arith.constant 15 : i32
    %27 = tpu.dynamic_rotate %0 by %c15_i32 dim 0 : vector<16x32xf32>, i32 -> vector<16x32xf32>
    %cst_6 = arith.constant 0.000000e+00 : f32
    %28 = vector.shape_cast %21 : vector<16x1xi1> to vector<16x1xi1>
    %29 = vector.broadcast %28 : vector<16x1xi1> to vector<16x32xi1>
    %30 = vector.broadcast %cst_6 : f32 to vector<16x32xf32>
    %31 = arith.select %29, %30, %27 : vector<16x32xi1>, vector<16x32xf32>
    %c0_7 = arith.constant 0 : index
    %c0_8 = arith.constant 0 : index
    %c0_9 = arith.constant 0 : index
    %32 = vector.load %arg2[%c0_7, %c0_8, %c0_9] : memref<3x32x32xf32, #tpu.memory_space<vmem>>, vector<1x32x32xf32>
    %33 = vector.shape_cast %32 : vector<1x32x32xf32> to vector<32x32xf32>
    %cst_10 = arith.constant dense<0.000000e+00> : vector<16x32xf32>
    %34 = tpu.matmul %26, %33, %cst_10 {dimension_numbers = #tpu.dot_dimension_numbers<[1], [0], [0], [1], [0, 0, 1, 1], [], []>} : vector<16x32xf32>, vector<32x32xf32>, vector<16x32xf32> -> vector<16x32xf32>
    %c1 = arith.constant 1 : index
    %c0_11 = arith.constant 0 : index
    %c0_12 = arith.constant 0 : index
    %35 = vector.load %arg2[%c1, %c0_11, %c0_12] : memref<3x32x32xf32, #tpu.memory_space<vmem>>, vector<1x32x32xf32>
    %36 = vector.shape_cast %35 : vector<1x32x32xf32> to vector<32x32xf32>
    %cst_13 = arith.constant dense<0.000000e+00> : vector<16x32xf32>
    %37 = tpu.matmul %0, %36, %cst_13 {dimension_numbers = #tpu.dot_dimension_numbers<[1], [0], [0], [1], [0, 0, 1, 1], [], []>} : vector<16x32xf32>, vector<32x32xf32>, vector<16x32xf32> -> vector<16x32xf32>
    %38 = arith.addf %34, %37 : vector<16x32xf32>
    %c2 = arith.constant 2 : index
    %c0_14 = arith.constant 0 : index
    %c0_15 = arith.constant 0 : index
    %39 = vector.load %arg2[%c2, %c0_14, %c0_15] : memref<3x32x32xf32, #tpu.memory_space<vmem>>, vector<1x32x32xf32>
    %40 = vector.shape_cast %39 : vector<1x32x32xf32> to vector<32x32xf32>
    %cst_16 = arith.constant dense<0.000000e+00> : vector<16x32xf32>
    %41 = tpu.matmul %31, %40, %cst_16 {dimension_numbers = #tpu.dot_dimension_numbers<[1], [0], [0], [1], [0, 0, 1, 1], [], []>} : vector<16x32xf32>, vector<32x32xf32>, vector<16x32xf32> -> vector<16x32xf32>
    %42 = arith.addf %38, %41 : vector<16x32xf32>
    %c0_17 = arith.constant 0 : index
    %c0_18 = arith.constant 0 : index
    %43 = vector.load %arg3[%c0_17, %c0_18] : memref<1x32xf32, #tpu.memory_space<vmem>>, vector<1x32xf32>
    %44 = vector.broadcast %43 : vector<1x32xf32> to vector<16x32xf32>
    %45 = arith.addf %42, %44 : vector<16x32xf32>
    %cst_19 = arith.constant dense<0.000000e+00> : vector<16xf32>
    %46 = vector.multi_reduction <add>, %45, %cst_19 [1] : vector<16x32xf32> to vector<16xf32>
    %47 = vector.shape_cast %46 : vector<16xf32> to vector<16x1xf32>
    %cst_20 = arith.constant 3.200000e+01 : f32
    %48 = vector.broadcast %cst_20 : f32 to vector<16x1xf32>
    %49 = arith.divf %47, %48 : vector<16x1xf32>
    %50 = arith.mulf %45, %45 : vector<16x32xf32>
    %cst_21 = arith.constant dense<0.000000e+00> : vector<16xf32>
    %51 = vector.multi_reduction <add>, %50, %cst_21 [1] : vector<16x32xf32> to vector<16xf32>
    %52 = vector.shape_cast %51 : vector<16xf32> to vector<16x1xf32>
    %cst_22 = arith.constant 3.200000e+01 : f32
    %53 = vector.broadcast %cst_22 : f32 to vector<16x1xf32>
    %54 = arith.divf %52, %53 : vector<16x1xf32>
    %55 = arith.mulf %49, %49 : vector<16x1xf32>
    %56 = arith.subf %54, %55 : vector<16x1xf32>
    %57 = vector.broadcast %49 : vector<16x1xf32> to vector<16x32xf32>
    %58 = arith.subf %45, %57 : vector<16x32xf32>
    %cst_23 = arith.constant 9.99999974E-6 : f32
    %59 = vector.broadcast %cst_23 : f32 to vector<16x1xf32>
    %60 = arith.addf %56, %59 : vector<16x1xf32>
    %61 = math.rsqrt %60 : vector<16x1xf32>
    %62 = vector.broadcast %61 : vector<16x1xf32> to vector<16x32xf32>
    %63 = arith.mulf %58, %62 : vector<16x32xf32>
    %c0_24 = arith.constant 0 : index
    %c0_25 = arith.constant 0 : index
    %64 = vector.load %arg4[%c0_24, %c0_25] : memref<1x32xf32, #tpu.memory_space<vmem>>, vector<1x32xf32>
    %65 = vector.broadcast %64 : vector<1x32xf32> to vector<16x32xf32>
    %66 = arith.mulf %63, %65 : vector<16x32xf32>
    %c0_26 = arith.constant 0 : index
    %c0_27 = arith.constant 0 : index
    %67 = vector.load %arg5[%c0_26, %c0_27] : memref<1x32xf32, #tpu.memory_space<vmem>>, vector<1x32xf32>
    %68 = vector.broadcast %67 : vector<1x32xf32> to vector<16x32xf32>
    %69 = arith.addf %66, %68 : vector<16x32xf32>
    %cst_28 = arith.constant 0.000000e+00 : f32
    %70 = vector.broadcast %cst_28 : f32 to vector<16x32xf32>
    %71 = arith.maximumf %69, %70 : vector<16x32xf32>
    %c1_i32_29 = arith.constant 1 : i32
    %72 = tpu.dynamic_rotate %71 by %c1_i32_29 dim 0 : vector<16x32xf32>, i32 -> vector<16x32xf32>
    %cst_30 = arith.constant 0.000000e+00 : f32
    %73 = vector.shape_cast %19 : vector<16x1xi1> to vector<16x1xi1>
    %74 = vector.broadcast %73 : vector<16x1xi1> to vector<16x32xi1>
    %75 = vector.broadcast %cst_30 : f32 to vector<16x32xf32>
    %76 = arith.select %74, %75, %72 : vector<16x32xi1>, vector<16x32xf32>
    %c15_i32_31 = arith.constant 15 : i32
    %77 = tpu.dynamic_rotate %71 by %c15_i32_31 dim 0 : vector<16x32xf32>, i32 -> vector<16x32xf32>
    %cst_32 = arith.constant 0.000000e+00 : f32
    %78 = vector.shape_cast %21 : vector<16x1xi1> to vector<16x1xi1>
    %79 = vector.broadcast %78 : vector<16x1xi1> to vector<16x32xi1>
    %80 = vector.broadcast %cst_32 : f32 to vector<16x32xf32>
    %81 = arith.select %79, %80, %77 : vector<16x32xi1>, vector<16x32xf32>
    %c0_33 = arith.constant 0 : index
    %c0_34 = arith.constant 0 : index
    %c0_35 = arith.constant 0 : index
    %82 = vector.load %arg6[%c0_33, %c0_34, %c0_35] : memref<3x32x32xf32, #tpu.memory_space<vmem>>, vector<1x32x32xf32>
    %83 = vector.shape_cast %82 : vector<1x32x32xf32> to vector<32x32xf32>
    %cst_36 = arith.constant dense<0.000000e+00> : vector<16x32xf32>
    %84 = tpu.matmul %76, %83, %cst_36 {dimension_numbers = #tpu.dot_dimension_numbers<[1], [0], [0], [1], [0, 0, 1, 1], [], []>} : vector<16x32xf32>, vector<32x32xf32>, vector<16x32xf32> -> vector<16x32xf32>
    %c1_37 = arith.constant 1 : index
    %c0_38 = arith.constant 0 : index
    %c0_39 = arith.constant 0 : index
    %85 = vector.load %arg6[%c1_37, %c0_38, %c0_39] : memref<3x32x32xf32, #tpu.memory_space<vmem>>, vector<1x32x32xf32>
    %86 = vector.shape_cast %85 : vector<1x32x32xf32> to vector<32x32xf32>
    %cst_40 = arith.constant dense<0.000000e+00> : vector<16x32xf32>
    %87 = tpu.matmul %71, %86, %cst_40 {dimension_numbers = #tpu.dot_dimension_numbers<[1], [0], [0], [1], [0, 0, 1, 1], [], []>} : vector<16x32xf32>, vector<32x32xf32>, vector<16x32xf32> -> vector<16x32xf32>
    %88 = arith.addf %84, %87 : vector<16x32xf32>
    %c2_41 = arith.constant 2 : index
    %c0_42 = arith.constant 0 : index
    %c0_43 = arith.constant 0 : index
    %89 = vector.load %arg6[%c2_41, %c0_42, %c0_43] : memref<3x32x32xf32, #tpu.memory_space<vmem>>, vector<1x32x32xf32>
    %90 = vector.shape_cast %89 : vector<1x32x32xf32> to vector<32x32xf32>
    %cst_44 = arith.constant dense<0.000000e+00> : vector<16x32xf32>
    %91 = tpu.matmul %81, %90, %cst_44 {dimension_numbers = #tpu.dot_dimension_numbers<[1], [0], [0], [1], [0, 0, 1, 1], [], []>} : vector<16x32xf32>, vector<32x32xf32>, vector<16x32xf32> -> vector<16x32xf32>
    %92 = arith.addf %88, %91 : vector<16x32xf32>
    %c0_45 = arith.constant 0 : index
    %c0_46 = arith.constant 0 : index
    %93 = vector.load %arg7[%c0_45, %c0_46] : memref<1x32xf32, #tpu.memory_space<vmem>>, vector<1x32xf32>
    %94 = vector.broadcast %93 : vector<1x32xf32> to vector<16x32xf32>
    %95 = arith.addf %92, %94 : vector<16x32xf32>
    %cst_47 = arith.constant dense<0.000000e+00> : vector<16xf32>
    %96 = vector.multi_reduction <add>, %95, %cst_47 [1] : vector<16x32xf32> to vector<16xf32>
    %97 = vector.shape_cast %96 : vector<16xf32> to vector<16x1xf32>
    %cst_48 = arith.constant 3.200000e+01 : f32
    %98 = vector.broadcast %cst_48 : f32 to vector<16x1xf32>
    %99 = arith.divf %97, %98 : vector<16x1xf32>
    %100 = arith.mulf %95, %95 : vector<16x32xf32>
    %cst_49 = arith.constant dense<0.000000e+00> : vector<16xf32>
    %101 = vector.multi_reduction <add>, %100, %cst_49 [1] : vector<16x32xf32> to vector<16xf32>
    %102 = vector.shape_cast %101 : vector<16xf32> to vector<16x1xf32>
    %cst_50 = arith.constant 3.200000e+01 : f32
    %103 = vector.broadcast %cst_50 : f32 to vector<16x1xf32>
    %104 = arith.divf %102, %103 : vector<16x1xf32>
    %105 = arith.mulf %99, %99 : vector<16x1xf32>
    %106 = arith.subf %104, %105 : vector<16x1xf32>
    %107 = vector.broadcast %99 : vector<16x1xf32> to vector<16x32xf32>
    %108 = arith.subf %95, %107 : vector<16x32xf32>
    %cst_51 = arith.constant 9.99999974E-6 : f32
    %109 = vector.broadcast %cst_51 : f32 to vector<16x1xf32>
    %110 = arith.addf %106, %109 : vector<16x1xf32>
    %111 = math.rsqrt %110 : vector<16x1xf32>
    %112 = vector.broadcast %111 : vector<16x1xf32> to vector<16x32xf32>
    %113 = arith.mulf %108, %112 : vector<16x32xf32>
    %c0_52 = arith.constant 0 : index
    %c0_53 = arith.constant 0 : index
    %114 = vector.load %arg8[%c0_52, %c0_53] : memref<1x32xf32, #tpu.memory_space<vmem>>, vector<1x32xf32>
    %115 = vector.broadcast %114 : vector<1x32xf32> to vector<16x32xf32>
    %116 = arith.mulf %113, %115 : vector<16x32xf32>
    %c0_54 = arith.constant 0 : index
    %c0_55 = arith.constant 0 : index
    %117 = vector.load %arg9[%c0_54, %c0_55] : memref<1x32xf32, #tpu.memory_space<vmem>>, vector<1x32xf32>
    %118 = vector.broadcast %117 : vector<1x32xf32> to vector<16x32xf32>
    %119 = arith.addf %116, %118 : vector<16x32xf32>
    %cst_56 = arith.constant 0.000000e+00 : f32
    %120 = vector.broadcast %cst_56 : f32 to vector<16x32xf32>
    %121 = arith.maximumf %119, %120 : vector<16x32xf32>
    %c0_57 = arith.constant 0 : index
    %c0_58 = arith.constant 0 : index
    %122 = vector.load %arg10[%c0_57, %c0_58] : memref<1x32xf32, #tpu.memory_space<vmem>>, vector<1x32xf32>
    "tpu.trace_start"() <{level = 10 : i32, message = "of,mf->om"}> : () -> ()
    %cst_59 = arith.constant dense<0.000000e+00> : vector<1x16xf32>
    %123 = tpu.matmul %122, %121, %cst_59 {dimension_numbers = #tpu.dot_dimension_numbers<[1], [1], [0], [0], [0, 0, 1, 0], [], []>} : vector<1x32xf32>, vector<16x32xf32>, vector<1x16xf32> -> vector<1x16xf32>
    "tpu.trace_stop"() : () -> ()
    %c0_60 = arith.constant 0 : index
    %c0_61 = arith.constant 0 : index
    %124 = vector.load %arg11[%c0_60, %c0_61] : memref<1x1xf32, #tpu.memory_space<vmem>>, vector<1x1xf32>
    %125 = vector.broadcast %124 : vector<1x1xf32> to vector<1x16xf32>
    %126 = arith.addf %123, %125 : vector<1x16xf32>
    %cst_62 = arith.constant 0.000000e+00 : f32
    %127 = vector.broadcast %cst_62 : f32 to vector<1x16xf32>
    %128 = arith.maximumf %126, %127 : vector<1x16xf32>
    %c0_63 = arith.constant 0 : index
    %c0_64 = arith.constant 0 : index
    %c0_65 = arith.constant 0 : index
    %129 = vector.load %arg12[%c0_63, %c0_64, %c0_65] : memref<1x1x16xf32, #tpu.memory_space<vmem>>, vector<1x1x16xf32>
    %130 = vector.shape_cast %129 : vector<1x1x16xf32> to vector<1x16xf32>
    %131 = vector.shape_cast %128 : vector<1x16xf32> to vector<1x1x16xf32>
    tpu.vector_store %arg12[%c0_63, %c0_64, %c0_65], %131 {strides = array<i32>} : memref<1x1x16xf32, #tpu.memory_space<vmem>>, vector<1x1x16xf32>,
    return
  }
  func.func @transform_0(%arg0: i32) -> (i32, i32) {
    %c0_i32 = arith.constant 0 : i32
    %c0_i32_0 = arith.constant 0 : i32
    return %arg0, %c0_i32 : i32, i32
  }
  func.func @transform_1(%arg0: i32) -> (i32, i32, i32) {
    %c0_i32 = arith.constant 0 : i32
    %c0_i32_0 = arith.constant 0 : i32
    %c0_i32_1 = arith.constant 0 : i32
    %c0_i32_2 = arith.constant 0 : i32
    return %c0_i32, %c0_i32_0, %c0_i32_1 : i32, i32, i32
  }
  func.func @transform_2(%arg0: i32) -> (i32, i32) {
    %c0_i32 = arith.constant 0 : i32
    %c0_i32_0 = arith.constant 0 : i32
    %c0_i32_1 = arith.constant 0 : i32
    return %c0_i32, %c0_i32_0 : i32, i32
  }
  func.func @transform_3(%arg0: i32) -> (i32, i32) {
    %c0_i32 = arith.constant 0 : i32
    %c0_i32_0 = arith.constant 0 : i32
    %c0_i32_1 = arith.constant 0 : i32
    return %c0_i32, %c0_i32_0 : i32, i32
  }
  func.func @transform_4(%arg0: i32) -> (i32, i32) {
    %c0_i32 = arith.constant 0 : i32
    %c0_i32_0 = arith.constant 0 : i32
    %c0_i32_1 = arith.constant 0 : i32
    return %c0_i32, %c0_i32_0 : i32, i32
  }
  func.func @transform_5(%arg0: i32) -> (i32, i32, i32) {
    %c0_i32 = arith.constant 0 : i32
    %c0_i32_0 = arith.constant 0 : i32
    %c0_i32_1 = arith.constant 0 : i32
    %c0_i32_2 = arith.constant 0 : i32
    return %c0_i32, %c0_i32_0, %c0_i32_1 : i32, i32, i32
  }
  func.func @transform_6(%arg0: i32) -> (i32, i32) {
    %c0_i32 = arith.constant 0 : i32
    %c0_i32_0 = arith.constant 0 : i32
    %c0_i32_1 = arith.constant 0 : i32
    return %c0_i32, %c0_i32_0 : i32, i32
  }
  func.func @transform_7(%arg0: i32) -> (i32, i32) {
    %c0_i32 = arith.constant 0 : i32
    %c0_i32_0 = arith.constant 0 : i32
    %c0_i32_1 = arith.constant 0 : i32
    return %c0_i32, %c0_i32_0 : i32, i32
  }
  func.func @transform_8(%arg0: i32) -> (i32, i32) {
    %c0_i32 = arith.constant 0 : i32
    %c0_i32_0 = arith.constant 0 : i32
    %c0_i32_1 = arith.constant 0 : i32
    return %c0_i32, %c0_i32_0 : i32, i32
  }
  func.func @transform_9(%arg0: i32) -> (i32, i32) {
    %c0_i32 = arith.constant 0 : i32
    %c0_i32_0 = arith.constant 0 : i32
    %c0_i32_1 = arith.constant 0 : i32
    return %c0_i32, %c0_i32_0 : i32, i32
  }
  func.func @transform_10(%arg0: i32) -> (i32, i32) {
    %c0_i32 = arith.constant 0 : i32
    %c0_i32_0 = arith.constant 0 : i32
    %c0_i32_1 = arith.constant 0 : i32
    return %c0_i32, %c0_i32_0 : i32, i32
  }
  func.func @transform_11(%arg0: i32) -> (i32, i32, i32) {
    %c0_i32 = arith.constant 0 : i32
    %c0_i32_0 = arith.constant 0 : i32
    %c0_i32_1 = arith.constant 0 : i32
    return %arg0, %c0_i32, %c0_i32_0 : i32, i32, i32
  }
}

</mosaic_0001>

<llo_original>
// kernel: tpu_custom_call.1
$region0: #{tpu_custom_call.1}
  #allocation0 [shape = 'u32[]', space=smem, size = 0x4, offset = 0x4, fixed_abs, tag = 'smem constant byte address 0x4 - core index']
  #allocation1 [shape = 'u32[144,128]{1,0:T(1,128)}', space=vmem, size = 0x12000, scoped, tag = 'internal scratch']
  #allocation2 [shape = 'f32[1,1]{1,0:T(1,128)S(1)}', space=vmem, size = 0x200, scoped, tag = 'scoped memory for tpu_custom_call.1']
  %s0 = inlined_call_operand.hbm [shape: f32[16,32], index: 0, kind: input, shape index: {}]
  %s1 = inlined_call_operand.hbm [shape: f32[3,32,32], index: 1, kind: input, shape index: {}]
  %s2 = inlined_call_operand.vmem [shape: f32[1,32], index: 2, kind: input, shape index: {}]
  %s3 = inlined_call_operand.vmem [shape: f32[1,32], index: 3, kind: input, shape index: {}]
  %s4 = inlined_call_operand.vmem [shape: f32[1,32], index: 4, kind: input, shape index: {}]
  %s5 = inlined_call_operand.hbm [shape: f32[3,32,32], index: 5, kind: input, shape index: {}]
  %s6 = inlined_call_operand.vmem [shape: f32[1,32], index: 6, kind: input, shape index: {}]
  %s7 = inlined_call_operand.vmem [shape: f32[1,32], index: 7, kind: input, shape index: {}]
  %s8 = inlined_call_operand.vmem [shape: f32[1,32], index: 8, kind: input, shape index: {}]
  %s9 = inlined_call_operand.vmem [shape: f32[1,32], index: 9, kind: input, shape index: {}]
  %s10 = inlined_call_operand.<no memory space> [shape: f32[1,1], index: 10, kind: input, shape index: {}]
  %s11 = inlined_call_operand.hbm [shape: f32[1,1,16], index: 11, kind: output, shape index: {}]
  %s12 = sld [smem:[#allocation0]]
  $region66: #{tpu_custom_call.1} parent=0
    _
  %s14 = ssub.s32 1, %s12
  %s15 = scalar_select 0, %s14, %s12
  %v16 = vstv %s10
  %17 = vst [vmem:[#allocation2] sm:$0x1] %v16
  $region1: #{tpu_custom_call.1} parent=0
    #allocation3 [shape = 'u8[8192]{0}', space=vmem, size = 0x2000, scoped, tag = 'input window, operand 0, single buffered']
    #allocation4 [shape = 's32[1]{0}', space=sflag, size = 0x4, scoped, tag = 'scoped memory for tpu_custom_call.1']
    #allocation5 [shape = 's32[1]{0}', space=sflag, size = 0x4, scoped, tag = 'scoped memory for tpu_custom_call.1']
    #allocation6 [shape = 'u8[49152]{0}', space=vmem, size = 0xc000, scoped, tag = 'input window, operand 1, single buffered']
    #allocation7 [shape = 's32[1]{0}', space=sflag, size = 0x4, scoped, tag = 'scoped memory for tpu_custom_call.1']
    #allocation8 [shape = 'u8[49152]{0}', space=vmem, size = 0xc000, scoped, tag = 'input window, operand 5, single buffered']
    #allocation9 [shape = 'u8[512]{0}', space=vmem, size = 0x400, scoped, tag = 'output window, operand 0, single buffered']
    %18 = vsyncpa [#allocation4], 0
    %19 = vsyncpa [#allocation7], 0
    %20 = vsyncpa [#allocation5], 0
    // Predicated region
    $region2: #{tpu_custom_call.1} parent=1 // pred_check
      _
    $region3: #{tpu_custom_call.1} parent=1 // pred_check_branch
      %22 = sbr.rel (0) target = $region5
    $region4: #{tpu_custom_call.1} parent=1 // pred_region
      %s24 = ssub.s32 256, 256
      %25 = vsyncadd [#allocation4], %s24
      %s26 = sshll.u32 [#allocation3], 4
      %s27 = int_to_ptr.vmem [resolvable:$true] %s26
      %32 = dma.hbm_to_vmem [thread:$0]  %s0, 256, %s27, [#allocation4], 128, 128, 8
    $region5: #{tpu_custom_call.1} parent=1 // pred_fallthru
      _
    // Predicated region
    $region6: #{tpu_custom_call.1} parent=1 // pred_check
      _
    $region7: #{tpu_custom_call.1} parent=1 // pred_check_branch
      %34 = sbr.rel (0) target = $region9
    $region8: #{tpu_custom_call.1} parent=1 // pred_region
      %s36 = ssub.s32 1536, 1536
      %37 = vsyncadd [#allocation7], %s36
      %s38 = sshll.u32 [#allocation6], 4
      %s39 = int_to_ptr.vmem [resolvable:$true] %s38
      %44 = dma.hbm_to_vmem [thread:$0]  %s1, 1536, %s39, [#allocation7], 128, 128, 8
    $region9: #{tpu_custom_call.1} parent=1 // pred_fallthru
      _
    // Predicated region
    $region10: #{tpu_custom_call.1} parent=1 // pred_check
      _
    $region11: #{tpu_custom_call.1} parent=1 // pred_check_branch
      %46 = sbr.rel (0) target = $region13
    $region12: #{tpu_custom_call.1} parent=1 // pred_region
      _
    $region13: #{tpu_custom_call.1} parent=1 // pred_fallthru
      _
    // Predicated region
    $region14: #{tpu_custom_call.1} parent=1 // pred_check
      _
    $region15: #{tpu_custom_call.1} parent=1 // pred_check_branch
      %48 = sbr.rel (0) target = $region17
    $region16: #{tpu_custom_call.1} parent=1 // pred_region
      _
    $region17: #{tpu_custom_call.1} parent=1 // pred_fallthru
      _
    // Predicated region
    $region18: #{tpu_custom_call.1} parent=1 // pred_check
      _
    $region19: #{tpu_custom_call.1} parent=1 // pred_check_branch
      %50 = sbr.rel (0) target = $region21
    $region20: #{tpu_custom_call.1} parent=1 // pred_region
      _
    $region21: #{tpu_custom_call.1} parent=1 // pred_fallthru
      _
    // Predicated region
    $region22: #{tpu_custom_call.1} parent=1 // pred_check
      _
    $region23: #{tpu_custom_call.1} parent=1 // pred_check_branch
      %52 = sbr.rel (0) target = $region25
    $region24: #{tpu_custom_call.1} parent=1 // pred_region
      %s54 = ssub.s32 1536, 1536
      %55 = vsyncadd [#allocation7], %s54
      %s56 = sshll.u32 [#allocation8], 4
      %s57 = int_to_ptr.vmem [resolvable:$true] %s56
      %62 = dma.hbm_to_vmem [thread:$0]  %s5, 1536, %s57, [#allocation7], 128, 128, 8
    $region25: #{tpu_custom_call.1} parent=1 // pred_fallthru
      _
    // Predicated region
    $region26: #{tpu_custom_call.1} parent=1 // pred_check
      _
    $region27: #{tpu_custom_call.1} parent=1 // pred_check_branch
      %64 = sbr.rel (0) target = $region29
    $region28: #{tpu_custom_call.1} parent=1 // pred_region
      _
    $region29: #{tpu_custom_call.1} parent=1 // pred_fallthru
      _
    // Predicated region
    $region30: #{tpu_custom_call.1} parent=1 // pred_check
      _
    $region31: #{tpu_custom_call.1} parent=1 // pred_check_branch
      %66 = sbr.rel (0) target = $region33
    $region32: #{tpu_custom_call.1} parent=1 // pred_region
      _
    $region33: #{tpu_custom_call.1} parent=1 // pred_fallthru
      _
    // Predicated region
    $region34: #{tpu_custom_call.1} parent=1 // pred_check
      _
    $region35: #{tpu_custom_call.1} parent=1 // pred_check_branch
      %68 = sbr.rel (0) target = $region37
    $region36: #{tpu_custom_call.1} parent=1 // pred_region
      _
    $region37: #{tpu_custom_call.1} parent=1 // pred_fallthru
      _
    // Predicated region
    $region38: #{tpu_custom_call.1} parent=1 // pred_check
      _
    $region39: #{tpu_custom_call.1} parent=1 // pred_check_branch
      %70 = sbr.rel (0) target = $region41
    $region40: #{tpu_custom_call.1} parent=1 // pred_region
      _
    $region41: #{tpu_custom_call.1} parent=1 // pred_fallthru
      _
    // Predicated region
    $region42: #{tpu_custom_call.1} parent=1 // pred_check
      _
    $region43: #{tpu_custom_call.1} parent=1 // pred_check_branch
      %72 = sbr.rel (0) target = $region45
    $region44: #{tpu_custom_call.1} parent=1 // pred_region
      _
    $region45: #{tpu_custom_call.1} parent=1 // pred_fallthru
      _
    // Predicated region
    $region46: #{tpu_custom_call.1} parent=1 // pred_check
      _
    $region47: #{tpu_custom_call.1} parent=1 // pred_check_branch
      %74 = sbr.rel (0) target = $region49
    $region48: #{tpu_custom_call.1} parent=1 // pred_region
      %75 = dma.done [#allocation4], 256
    $region49: #{tpu_custom_call.1} parent=1 // pred_fallthru
      _
    // Predicated region
    $region50: #{tpu_custom_call.1} parent=1 // pred_check
      _
    $region51: #{tpu_custom_call.1} parent=1 // pred_check_branch
      %77 = sbr.rel (0) target = $region53
    $region52: #{tpu_custom_call.1} parent=1 // pred_region
      %78 = dma.done [#allocation7], 1536
    $region53: #{tpu_custom_call.1} parent=1 // pred_fallthru
      _
    // Predicated region
    $region54: #{tpu_custom_call.1} parent=1 // pred_check
      _
    $region55: #{tpu_custom_call.1} parent=1 // pred_check_branch
      %80 = sbr.rel (0) target = $region57
    $region56: #{tpu_custom_call.1} parent=1 // pred_region
      %81 = dma.done [#allocation7], 1536
    $region57: #{tpu_custom_call.1} parent=1 // pred_fallthru
      _
    %v82 = vld [vmem:[#allocation3] sm:$0xff]
    %v83 = vld [vmem:[#allocation3 + $0x8] sm:$0xff]
    %v84 = vlaneseq
    %v85 = vshrl.u32 %v84, 7
    %v86 = vadd.s32 %v85, 8
    %vm87 = vcmp.lt.s32.totalorder %v85, 0
    %v88 = vsub.s32 0, %v85
    %v89 = vsel %vm87, %v88, %v85
    %v90 = vshrl.u32 %v89, 3
    %v91 = vand.u32 %v89, 7
    %v92 = vsub.s32 0, %v91
    %v93 = vsel %vm87, %v92, %v91
    %vm94 = vcmp.lt.s32.totalorder %v86, 0
    %v95 = vsub.s32 0, %v86
    %v96 = vsel %vm94, %v95, %v86
    %v97 = vshrl.u32 %v96, 3
    %v98 = vand.u32 %v96, 7
    %v99 = vsub.s32 0, %v98
    %v100 = vsel %vm94, %v99, %v98
    %vm101 = vcmp.ne.s32.totalorder %v93, 0
    %vm102 = vcmp.ne.s32.totalorder %v100, 0
    %vm103 = vcmp.lt.s32.totalorder %v93, 0
    %vm104 = vcmp.lt.s32.totalorder %v100, 0
    %vm105 = vmand %vm103, %vm101
    %vm106 = vmand %vm104, %vm102
    %v107 = vadd.s32 %v93, 8
    %v108 = vadd.s32 %v100, 8
    %v109 = vsel %vm105, %v107, %v93
    %v110 = vsel %vm106, %v108, %v100
    %vm111 = vcmp.eq.s32.totalorder %v109, 0
    %vm112 = vcmp.eq.s32.totalorder %v110, 0
    %vm113 = vcmp.eq.s32.totalorder %v109, 7
    %vm114 = vcmp.eq.s32.totalorder %v110, 7
    %v115 = vrot.slane %v82, 7
    %v116 = vrot.slane %v83, 7
    %vm117 = vcmp.lt.s32.totalorder %v85, 1
    %v118 = vsel %vm117, %v115, %v116
    %v119 = vsel %vm117, %v116, %v115
    %v120 = vsel %vm111, 1, 0
    %v121 = vsel %vm112, 1, 0
    %vm122 = vcmp.eq.s32.totalorder %v120, 1
    %vm123 = vcmp.eq.s32.totalorder %v121, 1
    %v124 = vsel %vm122, 0.0, %v119
    %v125 = vsel %vm123, 0.0, %v118
    %v126 = vrot.slane %v82, 1
    %v127 = vrot.slane %v83, 1
    %vm128 = vcmp.lt.s32.totalorder %v85, 7
    %v129 = vsel %vm128, %v126, %v127
    %v130 = vsel %vm128, %v127, %v126
    %v131 = vsel %vm113, 1, 0
    %v132 = vsel %vm114, 1, 0
    %vm133 = vcmp.eq.s32.totalorder %v131, 1
    %vm134 = vcmp.eq.s32.totalorder %v132, 1
    %v135 = vsel %vm133, 0.0, %v129
    %v136 = vsel %vm134, 0.0, %v130
    %v137 = vld [vmem:[#allocation6] sm:$0xff]
    %v138 = vld [vmem:[#allocation6 + $0x8] sm:$0xff]
    %v139 = vld [vmem:[#allocation6 + $0x10] sm:$0xff]
    %v140 = vld [vmem:[#allocation6 + $0x18] sm:$0xff]
    %s141 = scalar_lea.vmem [#allocation6], 32
    %v142 = vld [vmem:[%s141] sm:$0xff]
    %v143 = vld [vmem:[%s141 + $0x8] sm:$0xff]
    %v144 = vld [vmem:[%s141 + $0x10] sm:$0xff]
    %v145 = vld [vmem:[%s141 + $0x18] sm:$0xff]
    %vm146 = vcmask 261120
    %v148 = vsel %vm146, %v82, 0
    %v151 = vsel %vm146, %v83, 0
    %153 = vmatprep.subr.mxu0 0.0
    %154 = vmatpush1.msra.mxu0 %v142
    %155 = vmatprep.subr.mxu0 0.0
    %156 = vmatpush1.msra.mxu0 %v143
    %157 = vmatprep.subr.mxu0 0.0
    %158 = vmatpush1.msra.mxu0 %v144
    %159 = vmatprep.subr.mxu0 0.0
    %160 = vmatpush1.msra.mxu0 %v145
    %161 = vmatprep.subr.mxu0 0.0
    %162 = vmatpush1.msra.mxu0 0.0
    %163 = vmatprep.subr.mxu0 0.0
    %164 = vmatpush1.msra.mxu0 0.0
    %165 = vmatprep.subr.mxu0 0.0
    %166 = vmatpush1.msra.mxu0 0.0
    %167 = vmatprep.subr.mxu0 0.0
    %168 = vmatpush1.msra.mxu0 0.0
    %169 = vmatprep.subr.mxu0 0.0
    %170 = vmatpush1.msra.mxu0 0.0
    %171 = vmatprep.subr.mxu0 0.0
    %172 = vmatpush1.msra.mxu0 0.0
    %173 = vmatprep.subr.mxu0 0.0
    %174 = vmatpush1.msra.mxu0 0.0
    %175 = vmatprep.subr.mxu0 0.0
    %176 = vmatpush1.msra.mxu0 0.0
    %177 = vmatprep.subr.mxu0 0.0
    %178 = vmatpush1.msra.mxu0 0.0
    %179 = vmatprep.subr.mxu0 0.0
    %180 = vmatpush1.msra.mxu0 0.0
    %181 = vmatprep.subr.mxu0 0.0
    %182 = vmatpush1.msra.mxu0 0.0
    %183 = vmatprep.subr.mxu0 0.0
    %184 = vmatpush1.msra.mxu0 0.0
    %185 = vmatprep.subr.mxu0 0.0
    %186 = vmatpush1.msra.mxu0 0.0
    %187 = vmatprep.subr.mxu0 0.0
    %188 = vmatpush1.msra.mxu0 0.0
    %189 = vmatprep.subr.mxu0 0.0
    %190 = vmatpush1.msra.mxu0 0.0
    %191 = vmatprep.subr.mxu0 0.0
    %192 = vmatpush1.msra.mxu0 0.0
    %193 = vmatprep.subr.mxu0 0.0
    %194 = vmatpush1.msra.mxu0 0.0
    %195 = vmatprep.subr.mxu0 0.0
    %196 = vmatpush1.msra.mxu0 0.0
    %197 = vmatprep.subr.mxu0 0.0
    %198 = vmatpush1.msra.mxu0 0.0
    %199 = vmatprep.subr.mxu0 0.0
    %200 = vmatpush1.msra.mxu0 0.0
    %201 = vmatprep.subr.mxu0 0.0
    %202 = vmatpush1.msra.mxu0 0.0
    %203 = vmatprep.subr.mxu0 0.0
    %204 = vmatpush1.msra.mxu0 0.0
    %205 = vmatprep.subr.mxu0 0.0
    %206 = vmatpush1.msra.mxu0 0.0
    %207 = vmatprep.subr.mxu0 0.0
    %208 = vmatpush1.msra.mxu0 0.0
    %209 = vmatprep.subr.mxu0 0.0
    %210 = vmatpush1.msra.mxu0 0.0
    %211 = vmatprep.subr.mxu0 0.0
    %212 = vmatpush1.msra.mxu0 0.0
    %213 = vmatprep.subr.mxu0 0.0
    %214 = vmatpush1.msra.mxu0 0.0
    %215 = vmatprep.subr.mxu0 0.0
    %216 = vmatpush1.msra.mxu0 0.0
    %217 = vmatprep.mubr.f32.mxu0 0.0
    %218 = vmatmul.mubr.f32.gmra.mrb[0].mxu0 %v148
    %v219 = vpop.f32.mrb[0].mxu0
    %v220 = vadd.f32 0.0, %v219
    %v221 = vpop.f32.mrb[0].mxu0
    %222 = vmatprep.mubr.f32.mxu0 0.0
    %223 = vmatmul.mubr.f32.gmra.mrb[0].mxu0 %v151
    %v224 = vpop.f32.mrb[0].mxu0
    %v225 = vadd.f32 0.0, %v224
    %v226 = vpop.f32.mrb[0].mxu0
    %227 = vdwg.mxu0
    %v229 = vsel %vm146, %v124, 0
    %v232 = vsel %vm146, %v125, 0
    %234 = vmatprep.subr.mxu0 0.0
    %235 = vmatpush1.msra.mxu0 %v137
    %236 = vmatprep.subr.mxu0 0.0
    %237 = vmatpush1.msra.mxu0 %v138
    %238 = vmatprep.subr.mxu0 0.0
    %239 = vmatpush1.msra.mxu0 %v139
    %240 = vmatprep.subr.mxu0 0.0
    %241 = vmatpush1.msra.mxu0 %v140
    %242 = vmatprep.subr.mxu0 0.0
    %243 = vmatpush1.msra.mxu0 0.0
    %244 = vmatprep.subr.mxu0 0.0
    %245 = vmatpush1.msra.mxu0 0.0
    %246 = vmatprep.subr.mxu0 0.0
    %247 = vmatpush1.msra.mxu0 0.0
    %248 = vmatprep.subr.mxu0 0.0
    %249 = vmatpush1.msra.mxu0 0.0
    %250 = vmatprep.subr.mxu0 0.0
    %251 = vmatpush1.msra.mxu0 0.0
    %252 = vmatprep.subr.mxu0 0.0
    %253 = vmatpush1.msra.mxu0 0.0
    %254 = vmatprep.subr.mxu0 0.0
    %255 = vmatpush1.msra.mxu0 0.0
    %256 = vmatprep.subr.mxu0 0.0
    %257 = vmatpush1.msra.mxu0 0.0
    %258 = vmatprep.subr.mxu0 0.0
    %259 = vmatpush1.msra.mxu0 0.0
    %260 = vmatprep.subr.mxu0 0.0
    %261 = vmatpush1.msra.mxu0 0.0
    %262 = vmatprep.subr.mxu0 0.0
    %263 = vmatpush1.msra.mxu0 0.0
    %264 = vmatprep.subr.mxu0 0.0
    %265 = vmatpush1.msra.mxu0 0.0
    %266 = vmatprep.subr.mxu0 0.0
    %267 = vmatpush1.msra.mxu0 0.0
    %268 = vmatprep.subr.mxu0 0.0
    %269 = vmatpush1.msra.mxu0 0.0
    %270 = vmatprep.subr.mxu0 0.0
    %271 = vmatpush1.msra.mxu0 0.0
    %272 = vmatprep.subr.mxu0 0.0
    %273 = vmatpush1.msra.mxu0 0.0
    %274 = vmatprep.subr.mxu0 0.0
    %275 = vmatpush1.msra.mxu0 0.0
    %276 = vmatprep.subr.mxu0 0.0
    %277 = vmatpush1.msra.mxu0 0.0
    %278 = vmatprep.subr.mxu0 0.0
    %279 = vmatpush1.msra.mxu0 0.0
    %280 = vmatprep.subr.mxu0 0.0
    %281 = vmatpush1.msra.mxu0 0.0
    %282 = vmatprep.subr.mxu0 0.0
    %283 = vmatpush1.msra.mxu0 0.0
    %284 = vmatprep.subr.mxu0 0.0
    %285 = vmatpush1.msra.mxu0 0.0
    %286 = vmatprep.subr.mxu0 0.0
    %287 = vmatpush1.msra.mxu0 0.0
    %288 = vmatprep.subr.mxu0 0.0
    %289 = vmatpush1.msra.mxu0 0.0
    %290 = vmatprep.subr.mxu0 0.0
    %291 = vmatpush1.msra.mxu0 0.0
    %292 = vmatprep.subr.mxu0 0.0
    %293 = vmatpush1.msra.mxu0 0.0
    %294 = vmatprep.subr.mxu0 0.0
    %295 = vmatpush1.msra.mxu0 0.0
    %296 = vmatprep.subr.mxu0 0.0
    %297 = vmatpush1.msra.mxu0 0.0
    %298 = vmatprep.mubr.f32.mxu0 0.0
    %299 = vmatmul.mubr.f32.gmra.mrb[0].mxu0 %v229
    %v300 = vpop.f32.mrb[0].mxu0
    %v301 = vadd.f32 %v220, %v300
    %v302 = vpop.f32.mrb[0].mxu0
    %303 = vmatprep.mubr.f32.mxu0 0.0
    %304 = vmatmul.mubr.f32.gmra.mrb[0].mxu0 %v232
    %v305 = vpop.f32.mrb[0].mxu0
    %v306 = vadd.f32 %v225, %v305
    %v307 = vpop.f32.mrb[0].mxu0
    %308 = vdwg.mxu0
    %s309 = scalar_lea.vmem [#allocation6], 64
    %v310 = vld [vmem:[%s309] sm:$0xff]
    %v311 = vld [vmem:[%s309 + $0x8] sm:$0xff]
    %v312 = vld [vmem:[%s309 + $0x10] sm:$0xff]
    %v313 = vld [vmem:[%s309 + $0x18] sm:$0xff]
    %v315 = vsel %vm146, %v135, 0
    %v318 = vsel %vm146, %v136, 0
    %320 = vmatprep.subr.mxu0 0.0
    %321 = vmatpush1.msra.mxu0 %v310
    %322 = vmatprep.subr.mxu0 0.0
    %323 = vmatpush1.msra.mxu0 %v311
    %324 = vmatprep.subr.mxu0 0.0
    %325 = vmatpush1.msra.mxu0 %v312
    %326 = vmatprep.subr.mxu0 0.0
    %327 = vmatpush1.msra.mxu0 %v313
    %328 = vmatprep.subr.mxu0 0.0
    %329 = vmatpush1.msra.mxu0 0.0
    %330 = vmatprep.subr.mxu0 0.0
    %331 = vmatpush1.msra.mxu0 0.0
    %332 = vmatprep.subr.mxu0 0.0
    %333 = vmatpush1.msra.mxu0 0.0
    %334 = vmatprep.subr.mxu0 0.0
    %335 = vmatpush1.msra.mxu0 0.0
    %336 = vmatprep.subr.mxu0 0.0
    %337 = vmatpush1.msra.mxu0 0.0
    %338 = vmatprep.subr.mxu0 0.0
    %339 = vmatpush1.msra.mxu0 0.0
    %340 = vmatprep.subr.mxu0 0.0
    %341 = vmatpush1.msra.mxu0 0.0
    %342 = vmatprep.subr.mxu0 0.0
    %343 = vmatpush1.msra.mxu0 0.0
    %344 = vmatprep.subr.mxu0 0.0
    %345 = vmatpush1.msra.mxu0 0.0
    %346 = vmatprep.subr.mxu0 0.0
    %347 = vmatpush1.msra.mxu0 0.0
    %348 = vmatprep.subr.mxu0 0.0
    %349 = vmatpush1.msra.mxu0 0.0
    %350 = vmatprep.subr.mxu0 0.0
    %351 = vmatpush1.msra.mxu0 0.0
    %352 = vmatprep.subr.mxu0 0.0
    %353 = vmatpush1.msra.mxu0 0.0
    %354 = vmatprep.subr.mxu0 0.0
    %355 = vmatpush1.msra.mxu0 0.0
    %356 = vmatprep.subr.mxu0 0.0
    %357 = vmatpush1.msra.mxu0 0.0
    %358 = vmatprep.subr.mxu0 0.0
    %359 = vmatpush1.msra.mxu0 0.0
    %360 = vmatprep.subr.mxu0 0.0
    %361 = vmatpush1.msra.mxu0 0.0
    %362 = vmatprep.subr.mxu0 0.0
    %363 = vmatpush1.msra.mxu0 0.0
    %364 = vmatprep.subr.mxu0 0.0
    %365 = vmatpush1.msra.mxu0 0.0
    %366 = vmatprep.subr.mxu0 0.0
    %367 = vmatpush1.msra.mxu0 0.0
    %368 = vmatprep.subr.mxu0 0.0
    %369 = vmatpush1.msra.mxu0 0.0
    %370 = vmatprep.subr.mxu0 0.0
    %371 = vmatpush1.msra.mxu0 0.0
    %372 = vmatprep.subr.mxu0 0.0
    %373 = vmatpush1.msra.mxu0 0.0
    %374 = vmatprep.subr.mxu0 0.0
    %375 = vmatpush1.msra.mxu0 0.0
    %376 = vmatprep.subr.mxu0 0.0
    %377 = vmatpush1.msra.mxu0 0.0
    %378 = vmatprep.subr.mxu0 0.0
    %379 = vmatpush1.msra.mxu0 0.0
    %380 = vmatprep.subr.mxu0 0.0
    %381 = vmatpush1.msra.mxu0 0.0
    %382 = vmatprep.subr.mxu0 0.0
    %383 = vmatpush1.msra.mxu0 0.0
    %384 = vmatprep.mubr.f32.mxu0 0.0
    %385 = vmatmul.mubr.f32.gmra.mrb[0].mxu0 %v315
    %v386 = vpop.f32.mrb[0].mxu0
    %v387 = vadd.f32 0.0, %v386
    %v388 = vpop.f32.mrb[0].mxu0
    %389 = vmatprep.mubr.f32.mxu0 0.0
    %390 = vmatmul.mubr.f32.gmra.mrb[0].mxu0 %v318
    %v391 = vpop.f32.mrb[0].mxu0
    %v392 = vadd.f32 0.0, %v391
    %v393 = vpop.f32.mrb[0].mxu0
    %394 = vdwg.mxu0
    %v395 = vadd.f32 %v301, %v387
    %v396 = vadd.f32 %v306, %v392
    %v397 = vld [vmem:[%s2] sm:$0x1]
    %v399 = vlaneseq
    %v400 = vshrl.u32 %v399, 7
    %v401 = vsub.s32 0, %v400
    %v402 = vrot.slane %v397, %v401
    %v404 = vadd.f32 %v395, %v402
    %v405 = vadd.f32 %v396, %v402
    %v406 = vsel %vm146, %v404, 0.0
    %407 = vadd.xlane.f32.xlu0 %v406
    %v408 = vpop.xlane.xlu0 %407
    %v409 = vsel %vm146, %v405, 0.0
    %410 = vadd.xlane.f32.xlu0 %v409
    %v411 = vpop.xlane.xlu0 %410
    %v412 = vrcp.pop 32.0
    %v413 = vmul.f32 %v408, %v412
    %v414 = vmul.f32 %v411, %v412
    %v415 = vmul.f32 %v404, %v404
    %v416 = vmul.f32 %v405, %v405
    %v417 = vsel %vm146, %v415, 0.0
    %418 = vadd.xlane.f32.xlu0 %v417
    %v419 = vpop.xlane.xlu0 %418
    %v420 = vsel %vm146, %v416, 0.0
    %421 = vadd.xlane.f32.xlu0 %v420
    %v422 = vpop.xlane.xlu0 %421
    %v423 = vmul.f32 %v419, %v412
    %v424 = vmul.f32 %v422, %v412
    %v425 = vmul.f32 %v413, %v413
    %v426 = vmul.f32 %v414, %v414
    %v427 = vsub.f32 %v423, %v425
    %v428 = vsub.f32 %v424, %v426
    %v429 = vsub.f32 %v404, %v413
    %v430 = vsub.f32 %v405, %v414
    %v431 = vadd.f32 %v427, 1e-05
    %v432 = vadd.f32 %v428, 1e-05
    %v433 = vrsqrt.pop %v431
    %v434 = vrsqrt.pop %v432
    %v435 = vmul.f32 %v429, %v433
    %v436 = vmul.f32 %v430, %v434
    %v437 = vld [vmem:[%s3] sm:$0x1]
    %v439 = vlaneseq
    %v440 = vshrl.u32 %v439, 7
    %v441 = vsub.s32 0, %v440
    %v442 = vrot.slane %v437, %v441
    %v444 = vmul.f32 %v435, %v442
    %v445 = vmul.f32 %v436, %v442
    %v446 = vld [vmem:[%s4] sm:$0x1]
    %v448 = vlaneseq
    %v449 = vshrl.u32 %v448, 7
    %v450 = vsub.s32 0, %v449
    %v451 = vrot.slane %v446, %v450
    %v453 = vadd.f32 %v444, %v451
    %v454 = vadd.f32 %v445, %v451
    %v455 = vmax.f32 %v453, 0.0
    %v456 = vmax.f32 %v454, 0.0
    %v457 = vrot.slane %v455, 7
    %v458 = vrot.slane %v456, 7
    %v459 = vsel %vm117, %v457, %v458
    %v460 = vsel %vm117, %v458, %v457
    %v461 = vsel %vm122, 0.0, %v460
    %v462 = vsel %vm123, 0.0, %v459
    %v463 = vrot.slane %v455, 1
    %v464 = vrot.slane %v456, 1
    %v465 = vsel %vm128, %v463, %v464
    %v466 = vsel %vm128, %v464, %v463
    %v467 = vsel %vm133, 0.0, %v465
    %v468 = vsel %vm134, 0.0, %v466
    %v469 = vld [vmem:[#allocation8] sm:$0xff]
    %v470 = vld [vmem:[#allocation8 + $0x8] sm:$0xff]
    %v471 = vld [vmem:[#allocation8 + $0x10] sm:$0xff]
    %v472 = vld [vmem:[#allocation8 + $0x18] sm:$0xff]
    %s473 = scalar_lea.vmem [#allocation8], 32
    %v474 = vld [vmem:[%s473] sm:$0xff]
    %v475 = vld [vmem:[%s473 + $0x8] sm:$0xff]
    %v476 = vld [vmem:[%s473 + $0x10] sm:$0xff]
    %v477 = vld [vmem:[%s473 + $0x18] sm:$0xff]
    %v479 = vsel %vm146, %v455, 0
    %v482 = vsel %vm146, %v456, 0
    %484 = vmatprep.subr.mxu0 0.0
    %485 = vmatpush1.msra.mxu0 %v474
    %486 = vmatprep.subr.mxu0 0.0
    %487 = vmatpush1.msra.mxu0 %v475
    %488 = vmatprep.subr.mxu0 0.0
    %489 = vmatpush1.msra.mxu0 %v476
    %490 = vmatprep.subr.mxu0 0.0
    %491 = vmatpush1.msra.mxu0 %v477
    %492 = vmatprep.subr.mxu0 0.0
    %493 = vmatpush1.msra.mxu0 0.0
    %494 = vmatprep.subr.mxu0 0.0
    %495 = vmatpush1.msra.mxu0 0.0
    %496 = vmatprep.subr.mxu0 0.0
    %497 = vmatpush1.msra.mxu0 0.0
    %498 = vmatprep.subr.mxu0 0.0
    %499 = vmatpush1.msra.mxu0 0.0
    %500 = vmatprep.subr.mxu0 0.0
    %501 = vmatpush1.msra.mxu0 0.0
    %502 = vmatprep.subr.mxu0 0.0
    %503 = vmatpush1.msra.mxu0 0.0
    %504 = vmatprep.subr.mxu0 0.0
    %505 = vmatpush1.msra.mxu0 0.0
    %506 = vmatprep.subr.mxu0 0.0
    %507 = vmatpush1.msra.mxu0 0.0
    %508 = vmatprep.subr.mxu0 0.0
    %509 = vmatpush1.msra.mxu0 0.0
    %510 = vmatprep.subr.mxu0 0.0
    %511 = vmatpush1.msra.mxu0 0.0
    %512 = vmatprep.subr.mxu0 0.0
    %513 = vmatpush1.msra.mxu0 0.0
    %514 = vmatprep.subr.mxu0 0.0
    %515 = vmatpush1.msra.mxu0 0.0
    %516 = vmatprep.subr.mxu0 0.0
    %517 = vmatpush1.msra.mxu0 0.0
    %518 = vmatprep.subr.mxu0 0.0
    %519 = vmatpush1.msra.mxu0 0.0
    %520 = vmatprep.subr.mxu0 0.0
    %521 = vmatpush1.msra.mxu0 0.0
    %522 = vmatprep.subr.mxu0 0.0
    %523 = vmatpush1.msra.mxu0 0.0
    %524 = vmatprep.subr.mxu0 0.0
    %525 = vmatpush1.msra.mxu0 0.0
    %526 = vmatprep.subr.mxu0 0.0
    %527 = vmatpush1.msra.mxu0 0.0
    %528 = vmatprep.subr.mxu0 0.0
    %529 = vmatpush1.msra.mxu0 0.0
    %530 = vmatprep.subr.mxu0 0.0
    %531 = vmatpush1.msra.mxu0 0.0
    %532 = vmatprep.subr.mxu0 0.0
    %533 = vmatpush1.msra.mxu0 0.0
    %534 = vmatprep.subr.mxu0 0.0
    %535 = vmatpush1.msra.mxu0 0.0
    %536 = vmatprep.subr.mxu0 0.0
    %537 = vmatpush1.msra.mxu0 0.0
    %538 = vmatprep.subr.mxu0 0.0
    %539 = vmatpush1.msra.mxu0 0.0
    %540 = vmatprep.subr.mxu0 0.0
    %541 = vmatpush1.msra.mxu0 0.0
    %542 = vmatprep.subr.mxu0 0.0
    %543 = vmatpush1.msra.mxu0 0.0
    %544 = vmatprep.subr.mxu0 0.0
    %545 = vmatpush1.msra.mxu0 0.0
    %546 = vmatprep.subr.mxu0 0.0
    %547 = vmatpush1.msra.mxu0 0.0
    %548 = vmatprep.mubr.f32.mxu0 0.0
    %549 = vmatmul.mubr.f32.gmra.mrb[0].mxu0 %v479
    %v550 = vpop.f32.mrb[0].mxu0
    %v551 = vadd.f32 0.0, %v550
    %v552 = vpop.f32.mrb[0].mxu0
    %553 = vmatprep.mubr.f32.mxu0 0.0
    %554 = vmatmul.mubr.f32.gmra.mrb[0].mxu0 %v482
    %v555 = vpop.f32.mrb[0].mxu0
    %v556 = vadd.f32 0.0, %v555
    %v557 = vpop.f32.mrb[0].mxu0
    %558 = vdwg.mxu0
    %v560 = vsel %vm146, %v461, 0
    %v563 = vsel %vm146, %v462, 0
    %565 = vmatprep.subr.mxu0 0.0
    %566 = vmatpush1.msra.mxu0 %v469
    %567 = vmatprep.subr.mxu0 0.0
    %568 = vmatpush1.msra.mxu0 %v470
    %569 = vmatprep.subr.mxu0 0.0
    %570 = vmatpush1.msra.mxu0 %v471
    %571 = vmatprep.subr.mxu0 0.0
    %572 = vmatpush1.msra.mxu0 %v472
    %573 = vmatprep.subr.mxu0 0.0
    %574 = vmatpush1.msra.mxu0 0.0
    %575 = vmatprep.subr.mxu0 0.0
    %576 = vmatpush1.msra.mxu0 0.0
    %577 = vmatprep.subr.mxu0 0.0
    %578 = vmatpush1.msra.mxu0 0.0
    %579 = vmatprep.subr.mxu0 0.0
    %580 = vmatpush1.msra.mxu0 0.0
    %581 = vmatprep.subr.mxu0 0.0
    %582 = vmatpush1.msra.mxu0 0.0
    %583 = vmatprep.subr.mxu0 0.0
    %584 = vmatpush1.msra.mxu0 0.0
    %585 = vmatprep.subr.mxu0 0.0
    %586 = vmatpush1.msra.mxu0 0.0
    %587 = vmatprep.subr.mxu0 0.0
    %588 = vmatpush1.msra.mxu0 0.0
    %589 = vmatprep.subr.mxu0 0.0
    %590 = vmatpush1.msra.mxu0 0.0
    %591 = vmatprep.subr.mxu0 0.0
    %592 = vmatpush1.msra.mxu0 0.0
    %593 = vmatprep.subr.mxu0 0.0
    %594 = vmatpush1.msra.mxu0 0.0
    %595 = vmatprep.subr.mxu0 0.0
    %596 = vmatpush1.msra.mxu0 0.0
    %597 = vmatprep.subr.mxu0 0.0
    %598 = vmatpush1.msra.mxu0 0.0
    %599 = vmatprep.subr.mxu0 0.0
    %600 = vmatpush1.msra.mxu0 0.0
    %601 = vmatprep.subr.mxu0 0.0
    %602 = vmatpush1.msra.mxu0 0.0
    %603 = vmatprep.subr.mxu0 0.0
    %604 = vmatpush1.msra.mxu0 0.0
    %605 = vmatprep.subr.mxu0 0.0
    %606 = vmatpush1.msra.mxu0 0.0
    %607 = vmatprep.subr.mxu0 0.0
    %608 = vmatpush1.msra.mxu0 0.0
    %609 = vmatprep.subr.mxu0 0.0
    %610 = vmatpush1.msra.mxu0 0.0
    %611 = vmatprep.subr.mxu0 0.0
    %612 = vmatpush1.msra.mxu0 0.0
    %613 = vmatprep.subr.mxu0 0.0
    %614 = vmatpush1.msra.mxu0 0.0
    %615 = vmatprep.subr.mxu0 0.0
    %616 = vmatpush1.msra.mxu0 0.0
    %617 = vmatprep.subr.mxu0 0.0
    %618 = vmatpush1.msra.mxu0 0.0
    %619 = vmatprep.subr.mxu0 0.0
    %620 = vmatpush1.msra.mxu0 0.0
    %621 = vmatprep.subr.mxu0 0.0
    %622 = vmatpush1.msra.mxu0 0.0
    %623 = vmatprep.subr.mxu0 0.0
    %624 = vmatpush1.msra.mxu0 0.0
    %625 = vmatprep.subr.mxu0 0.0
    %626 = vmatpush1.msra.mxu0 0.0
    %627 = vmatprep.subr.mxu0 0.0
    %628 = vmatpush1.msra.mxu0 0.0
    %629 = vmatprep.mubr.f32.mxu0 0.0
    %630 = vmatmul.mubr.f32.gmra.mrb[0].mxu0 %v560
    %v631 = vpop.f32.mrb[0].mxu0
    %v632 = vadd.f32 %v551, %v631
    %v633 = vpop.f32.mrb[0].mxu0
    %634 = vmatprep.mubr.f32.mxu0 0.0
    %635 = vmatmul.mubr.f32.gmra.mrb[0].mxu0 %v563
    %v636 = vpop.f32.mrb[0].mxu0
    %v637 = vadd.f32 %v556, %v636
    %v638 = vpop.f32.mrb[0].mxu0
    %639 = vdwg.mxu0
    %s640 = scalar_lea.vmem [#allocation8], 64
    %v641 = vld [vmem:[%s640] sm:$0xff]
    %v642 = vld [vmem:[%s640 + $0x8] sm:$0xff]
    %v643 = vld [vmem:[%s640 + $0x10] sm:$0xff]
    %v644 = vld [vmem:[%s640 + $0x18] sm:$0xff]
    %v646 = vsel %vm146, %v467, 0
    %v649 = vsel %vm146, %v468, 0
    %651 = vmatprep.subr.mxu0 0.0
    %652 = vmatpush1.msra.mxu0 %v641
    %653 = vmatprep.subr.mxu0 0.0
    %654 = vmatpush1.msra.mxu0 %v642
    %655 = vmatprep.subr.mxu0 0.0
    %656 = vmatpush1.msra.mxu0 %v643
    %657 = vmatprep.subr.mxu0 0.0
    %658 = vmatpush1.msra.mxu0 %v644
    %659 = vmatprep.subr.mxu0 0.0
    %660 = vmatpush1.msra.mxu0 0.0
    %661 = vmatprep.subr.mxu0 0.0
    %662 = vmatpush1.msra.mxu0 0.0
    %663 = vmatprep.subr.mxu0 0.0
    %664 = vmatpush1.msra.mxu0 0.0
    %665 = vmatprep.subr.mxu0 0.0
    %666 = vmatpush1.msra.mxu0 0.0
    %667 = vmatprep.subr.mxu0 0.0
    %668 = vmatpush1.msra.mxu0 0.0
    %669 = vmatprep.subr.mxu0 0.0
    %670 = vmatpush1.msra.mxu0 0.0
    %671 = vmatprep.subr.mxu0 0.0
    %672 = vmatpush1.msra.mxu0 0.0
    %673 = vmatprep.subr.mxu0 0.0
    %674 = vmatpush1.msra.mxu0 0.0
    %675 = vmatprep.subr.mxu0 0.0
    %676 = vmatpush1.msra.mxu0 0.0
    %677 = vmatprep.subr.mxu0 0.0
    %678 = vmatpush1.msra.mxu0 0.0
    %679 = vmatprep.subr.mxu0 0.0
    %680 = vmatpush1.msra.mxu0 0.0
    %681 = vmatprep.subr.mxu0 0.0
    %682 = vmatpush1.msra.mxu0 0.0
    %683 = vmatprep.subr.mxu0 0.0
    %684 = vmatpush1.msra.mxu0 0.0
    %685 = vmatprep.subr.mxu0 0.0
    %686 = vmatpush1.msra.mxu0 0.0
    %687 = vmatprep.subr.mxu0 0.0
    %688 = vmatpush1.msra.mxu0 0.0
    %689 = vmatprep.subr.mxu0 0.0
    %690 = vmatpush1.msra.mxu0 0.0
    %691 = vmatprep.subr.mxu0 0.0
    %692 = vmatpush1.msra.mxu0 0.0
    %693 = vmatprep.subr.mxu0 0.0
    %694 = vmatpush1.msra.mxu0 0.0
    %695 = vmatprep.subr.mxu0 0.0
    %696 = vmatpush1.msra.mxu0 0.0
    %697 = vmatprep.subr.mxu0 0.0
    %698 = vmatpush1.msra.mxu0 0.0
    %699 = vmatprep.subr.mxu0 0.0
    %700 = vmatpush1.msra.mxu0 0.0
    %701 = vmatprep.subr.mxu0 0.0
    %702 = vmatpush1.msra.mxu0 0.0
    %703 = vmatprep.subr.mxu0 0.0
    %704 = vmatpush1.msra.mxu0 0.0
    %705 = vmatprep.subr.mxu0 0.0
    %706 = vmatpush1.msra.mxu0 0.0
    %707 = vmatprep.subr.mxu0 0.0
    %708 = vmatpush1.msra.mxu0 0.0
    %709 = vmatprep.subr.mxu0 0.0
    %710 = vmatpush1.msra.mxu0 0.0
    %711 = vmatprep.subr.mxu0 0.0
    %712 = vmatpush1.msra.mxu0 0.0
    %713 = vmatprep.subr.mxu0 0.0
    %714 = vmatpush1.msra.mxu0 0.0
    %715 = vmatprep.mubr.f32.mxu0 0.0
    %716 = vmatmul.mubr.f32.gmra.mrb[0].mxu0 %v646
    %v717 = vpop.f32.mrb[0].mxu0
    %v718 = vadd.f32 0.0, %v717
    %v719 = vpop.f32.mrb[0].mxu0
    %720 = vmatprep.mubr.f32.mxu0 0.0
    %721 = vmatmul.mubr.f32.gmra.mrb[0].mxu0 %v649
    %v722 = vpop.f32.mrb[0].mxu0
    %v723 = vadd.f32 0.0, %v722
    %v724 = vpop.f32.mrb[0].mxu0
    %725 = vdwg.mxu0
    %v726 = vadd.f32 %v632, %v718
    %v727 = vadd.f32 %v637, %v723
    %v728 = vld [vmem:[%s6] sm:$0x1]
    %v730 = vlaneseq
    %v731 = vshrl.u32 %v730, 7
    %v732 = vsub.s32 0, %v731
    %v733 = vrot.slane %v728, %v732
    %v735 = vadd.f32 %v726, %v733
    %v736 = vadd.f32 %v727, %v733
    %v737 = vsel %vm146, %v735, 0.0
    %738 = vadd.xlane.f32.xlu0 %v737
    %v739 = vpop.xlane.xlu0 %738
    %v740 = vsel %vm146, %v736, 0.0
    %741 = vadd.xlane.f32.xlu0 %v740
    %v742 = vpop.xlane.xlu0 %741
    %v743 = vmul.f32 %v739, %v412
    %v744 = vmul.f32 %v742, %v412
    %v745 = vmul.f32 %v735, %v735
    %v746 = vmul.f32 %v736, %v736
    %v747 = vsel %vm146, %v745, 0.0
    %748 = vadd.xlane.f32.xlu0 %v747
    %v749 = vpop.xlane.xlu0 %748
    %v750 = vsel %vm146, %v746, 0.0
    %751 = vadd.xlane.f32.xlu0 %v750
    %v752 = vpop.xlane.xlu0 %751
    %v753 = vmul.f32 %v749, %v412
    %v754 = vmul.f32 %v752, %v412
    %v755 = vmul.f32 %v743, %v743
    %v756 = vmul.f32 %v744, %v744
    %v757 = vsub.f32 %v753, %v755
    %v758 = vsub.f32 %v754, %v756
    %v759 = vsub.f32 %v735, %v743
    %v760 = vsub.f32 %v736, %v744
    %v761 = vadd.f32 %v757, 1e-05
    %v762 = vadd.f32 %v758, 1e-05
    %v763 = vrsqrt.pop %v761
    %v764 = vrsqrt.pop %v762
    %v765 = vmul.f32 %v759, %v763
    %v766 = vmul.f32 %v760, %v764
    %v767 = vld [vmem:[%s7] sm:$0x1]
    %v769 = vlaneseq
    %v770 = vshrl.u32 %v769, 7
    %v771 = vsub.s32 0, %v770
    %v772 = vrot.slane %v767, %v771
    %v774 = vmul.f32 %v765, %v772
    %v775 = vmul.f32 %v766, %v772
    %v776 = vld [vmem:[%s8] sm:$0x1]
    %v778 = vlaneseq
    %v779 = vshrl.u32 %v778, 7
    %v780 = vsub.s32 0, %v779
    %v781 = vrot.slane %v776, %v780
    %v783 = vadd.f32 %v774, %v781
    %v784 = vadd.f32 %v775, %v781
    %v785 = vmax.f32 %v783, 0.0
    %v786 = vmax.f32 %v784, 0.0
    %v787 = vld [vmem:[%s9] sm:$0x1]
    %v788 = vld [vmem:[#allocation2] sm:$0x1]
    %790 = vset.pattern.permute.xlu0 0
    %791 = vperm.xlu0 %790, %v788
    %v792 = vpop.permute.xlu0 %791
    %v794 = vlaneseq
    %v795 = vshrl.u32 %v794, 7
    %v796 = vsub.s32 0, %v795
    %v797 = vrot.slane %v792, %v796
    %v799 = vsel %vm146, %v787, 0
    %v802 = vsel %vm146, %v785, 0
    %v805 = vsel %vm146, %v786, 0
    %807 = vmatprep.subr.mxu0 0.0
    %808 = vmatpush1.xpose.msra.mxu0 %v802
    %809 = vmatprep.subr.mxu0 0.0
    %810 = vmatpush1.xpose.msra.mxu0 %v805
    %811 = vmatprep.subr.mxu0 0.0
    %812 = vmatpush1.xpose.msra.mxu0 0.0
    %813 = vmatprep.subr.mxu0 0.0
    %814 = vmatpush1.xpose.msra.mxu0 0.0
    %815 = vmatprep.subr.mxu0 0.0
    %816 = vmatpush1.xpose.msra.mxu0 0.0
    %817 = vmatprep.subr.mxu0 0.0
    %818 = vmatpush1.xpose.msra.mxu0 0.0
    %819 = vmatprep.subr.mxu0 0.0
    %820 = vmatpush1.xpose.msra.mxu0 0.0
    %821 = vmatprep.subr.mxu0 0.0
    %822 = vmatpush1.xpose.msra.mxu0 0.0
    %823 = vmatprep.subr.mxu0 0.0
    %824 = vmatpush1.xpose.msra.mxu0 0.0
    %825 = vmatprep.subr.mxu0 0.0
    %826 = vmatpush1.xpose.msra.mxu0 0.0
    %827 = vmatprep.subr.mxu0 0.0
    %828 = vmatpush1.xpose.msra.mxu0 0.0
    %829 = vmatprep.subr.mxu0 0.0
    %830 = vmatpush1.xpose.msra.mxu0 0.0
    %831 = vmatprep.subr.mxu0 0.0
    %832 = vmatpush1.xpose.msra.mxu0 0.0
    %833 = vmatprep.subr.mxu0 0.0
    %834 = vmatpush1.xpose.msra.mxu0 0.0
    %835 = vmatprep.subr.mxu0 0.0
    %836 = vmatpush1.xpose.msra.mxu0 0.0
    %837 = vmatprep.subr.mxu0 0.0
    %838 = vmatpush1.xpose.msra.mxu0 0.0
    %839 = vmatprep.subr.mxu0 0.0
    %840 = vmatpush1.xpose.msra.mxu0 0.0
    %841 = vmatprep.subr.mxu0 0.0
    %842 = vmatpush1.xpose.msra.mxu0 0.0
    %843 = vmatprep.subr.mxu0 0.0
    %844 = vmatpush1.xpose.msra.mxu0 0.0
    %845 = vmatprep.subr.mxu0 0.0
    %846 = vmatpush1.xpose.msra.mxu0 0.0
    %847 = vmatprep.subr.mxu0 0.0
    %848 = vmatpush1.xpose.msra.mxu0 0.0
    %849 = vmatprep.subr.mxu0 0.0
    %850 = vmatpush1.xpose.msra.mxu0 0.0
    %851 = vmatprep.subr.mxu0 0.0
    %852 = vmatpush1.xpose.msra.mxu0 0.0
    %853 = vmatprep.subr.mxu0 0.0
    %854 = vmatpush1.xpose.msra.mxu0 0.0
    %855 = vmatprep.subr.mxu0 0.0
    %856 = vmatpush1.xpose.msra.mxu0 0.0
    %857 = vmatprep.subr.mxu0 0.0
    %858 = vmatpush1.xpose.msra.mxu0 0.0
    %859 = vmatprep.subr.mxu0 0.0
    %860 = vmatpush1.xpose.msra.mxu0 0.0
    %861 = vmatprep.subr.mxu0 0.0
    %862 = vmatpush1.xpose.msra.mxu0 0.0
    %863 = vmatprep.subr.mxu0 0.0
    %864 = vmatpush1.xpose.msra.mxu0 0.0
    %865 = vmatprep.subr.mxu0 0.0
    %866 = vmatpush1.xpose.msra.mxu0 0.0
    %867 = vmatprep.subr.mxu0 0.0
    %868 = vmatpush1.xpose.msra.mxu0 0.0
    %869 = vmatprep.subr.mxu0 0.0
    %870 = vmatpush1.xpose.msra.mxu0 0.0
    %871 = vmatprep.mubr.f32.mxu0 0.0
    %872 = vmatmul.mubr.f32.gmra.mrb[0].mxu0 %v799
    %v873 = vpop.f32.mrb[0].mxu0
    %v874 = vadd.f32 %v797, %v873
    %v875 = vpop.f32.mrb[0].mxu0
    %876 = vdwg.mxu0
    %v877 = vmax.f32 %v874, 0.0
    %vm878 = vcmask 122880
    %879 = vst.msk [vmem:[#allocation9] sm:$0x1] %vm878, %v877
    // Predicated region
    $region58: #{tpu_custom_call.1} parent=1 // pred_check
      _
    $region59: #{tpu_custom_call.1} parent=1 // pred_check_branch
      %881 = sbr.rel (0) target = $region61
    $region60: #{tpu_custom_call.1} parent=1 // pred_region
      %s883 = ssub.s32 16, 16
      %884 = vsyncadd [#allocation5], %s883
      %s886 = sshll.u32 [#allocation9], 4
      %s887 = int_to_ptr.vmem [resolvable:$true] %s886
      %889 = dma.vmem_to_hbm [thread:$0]  %s887, 16, %s11, [#allocation5]
    $region61: #{tpu_custom_call.1} parent=1 // pred_fallthru
      _
    // Predicated region
    $region62: #{tpu_custom_call.1} parent=1 // pred_check
      _
    $region63: #{tpu_custom_call.1} parent=1 // pred_check_branch
      %891 = sbr.rel (0) target = $region65
    $region64: #{tpu_custom_call.1} parent=1 // pred_region
      %892 = dma.done [#allocation5], 16
    $region65: #{tpu_custom_call.1} parent=1 // pred_fallthru
      _
    %893 = vsyncpa [#allocation4], 1
    %894 = vsyncpa [#allocation7], 1
    %895 = vsyncpa [#allocation5], 1

</llo_original>
